<compile_context>
chip_gen: v5e
topology: v5e:2x2
jax: 0.10.0
libtpu: 0.0.40
codegen_flags: <defaults>
</compile_context>

<pallas_src>
import jax
import jax.numpy as jnp
from jax.experimental import pallas as pl
from jax.experimental.pallas import tpu as pltpu

D_IN = 32     # stands in for X_train.shape[1]
H1 = 64
H2 = 32
D_OUT = 1

DEFAULT_BATCH_TILE = 4096   # multiple of 128; ~8 MiB per-tile VMEM at D_IN<=128


def mlp_kernel(x_ref, w1t_ref, b1_ref, w2t_ref, b2_ref, w3t_ref, b3_ref, o_ref):
    # x tile (tb, D) is the only large HBM stream; cast to bf16 for the MXU.
    # TODO(synk): the D=32 minor dim lane-pads to 128 in VMEM; if the producer
    # can supply bf16 and/or a lane-dense layout, the dominant stream shrinks 2-4x.
    x = x_ref[...].astype(jnp.bfloat16)

    # fc1 + ReLU:  h1t[f, t] = sum_d w1t[f, d] * x[t, d]   (NT pattern, no transposes)
    h1t = jax.lax.dot_general(
        w1t_ref[...], x,
        dimension_numbers=(((1,), (1,)), ((), ())),
        preferred_element_type=jnp.float32,
    )                                            # (H1, tb) f32
    h1t = jnp.maximum(h1t + b1_ref[...], 0.0)    # bias / ReLU in f32, lane-dense

    # fc2 + ReLU:  (H2, H1) @ (H1, tb) -> (H2, tb)
    h2t = jax.lax.dot_general(
        w2t_ref[...], h1t.astype(jnp.bfloat16),
        dimension_numbers=(((1,), (0,)), ((), ())),
        preferred_element_type=jnp.float32,
    )
    h2t = jnp.maximum(h2t + b2_ref[...], 0.0)    # (H2, tb)

    # fc3:  (1, H2) @ (H2, tb) -> (1, tb)  lane-dense output slab (no masked vst)
    yt = jax.lax.dot_general(
        w3t_ref[...], h2t.astype(jnp.bfloat16),
        dimension_numbers=(((1,), (0,)), ((), ())),
        preferred_element_type=jnp.float32,
    )
    o_ref[...] = yt + b3_ref[...]


def _round_up(a: int, m: int) -> int:
    return ((a + m - 1) // m) * m


def nn_y_forward(x, params, *, batch_tile: int = DEFAULT_BATCH_TILE):
    B, D = x.shape
    w1, b1, w2, b2, w3, b3 = params
    H1_, H2_, DO_ = w1.shape[1], w2.shape[1], w3.shape[1]

    # Transposed bf16 weights + column biases (tiny tensors, negligible cost):
    # every matmul becomes NT/NN on the MXU and every activation is [features, batch].
    w1t = jnp.transpose(w1).astype(jnp.bfloat16)           # (H1, D)
    w2t = jnp.transpose(w2).astype(jnp.bfloat16)           # (H2, H1)
    w3t = jnp.transpose(w3).astype(jnp.bfloat16)           # (DO, H2)
    b1c = jnp.reshape(b1, (H1_, 1)).astype(jnp.float32)
    b2c = jnp.reshape(b2, (H2_, 1)).astype(jnp.float32)
    b3c = jnp.reshape(b3, (DO_, 1)).astype(jnp.float32)

    # Tile selection: one full (128-rounded) tile for small batches; otherwise
    # `batch_tile` rows per grid step.  B > batch_tile guarantees >=2 grid steps,
    # so the "parallel" axis can shard across both TensorCores on v7x.
    if _round_up(B, 128) <= batch_tile:
        tb = _round_up(B, 128)
    else:
        tb = _round_up(batch_tile, 128)
    B_pad = _round_up(B, tb)
    if B_pad != B:
        x = jnp.pad(x, ((0, B_pad - B), (0, 0)))            # padded rows sliced off below
    grid = (B_pad // tb,)

    # Per-tile VMEM ~ 2*(tb*128*itemsize(x)) + f32/bf16 h1t/h2t (~8 MiB at tb=4096),
    # well under the 32 MiB scoped limit.  Advisory cost estimate accounts for the
    # 128-lane padding of the x block (real HBM traffic).
    cost = pl.CostEstimate(
        flops=2 * B_pad * (D * H1_ + H1_ * H2_ + H2_ * DO_),
        transcendentals=0,
        bytes_accessed=int(
            B_pad * _round_up(D, 128) * x.dtype.itemsize
            + w1t.size * 2 + w2t.size * 2 + w3t.size * 2
            + b1c.size * 4 + b2c.size * 4 + b3c.size * 4
            + B_pad * DO_ * 4
        ),
    )

    out = pl.pallas_call(
        mlp_kernel,
        out_shape=jax.ShapeDtypeStruct((DO_, B_pad), jnp.float32),
        grid_spec=pltpu.PrefetchScalarGridSpec(
            num_scalar_prefetch=0,
            grid=grid,
            in_specs=[
                # x streams over batch tiles; weights/biases have constant index
                # maps so they stay resident in VMEM (no re-DMA per step).
                # TODO(synk): add pipeline_mode=pl.Buffered(3) on the x spec only
                # if a profile still shows exposed DMA at this tile size.
                pl.BlockSpec((tb, D), lambda i: (i, 0)),
                pl.BlockSpec((H1_, D), lambda i: (0, 0)),    # w1^T
                pl.BlockSpec((H1_, 1), lambda i: (0, 0)),    # b1 (column)
                pl.BlockSpec((H2_, H1_), lambda i: (0, 0)),  # w2^T
                pl.BlockSpec((H2_, 1), lambda i: (0, 0)),    # b2 (column)
                pl.BlockSpec((DO_, H2_), lambda i: (0, 0)),  # w3^T
                pl.BlockSpec((DO_, 1), lambda i: (0, 0)),    # b3
            ],
            # Lane-dense output: each grid step writes a full (DO, tb) slab.
            out_specs=pl.BlockSpec((DO_, tb), lambda i: (0, i)),
        ),
        compiler_params=pltpu.CompilerParams(
            dimension_semantics=("parallel",),
            vmem_limit_bytes=32 * 1024 * 1024,
        ),
        cost_estimate=cost,
    )(x, w1t, b1c, w2t, b2c, w3t, b3c)

    # (DO, B_pad) -> (B, DO) to match the PyTorch output shape.
    # TODO(synk): if the consumer accepts a (1, B) output, skip this transpose
    # (it is a separate XLA op with its own HBM round trip).
    return jnp.transpose(out)[:B]


def init_params(key):
    """PyTorch-default-like Linear init: U(-1/sqrt(fan_in), 1/sqrt(fan_in))."""
    def linear_init(k, fan_in, fan_out):
        kw, kb = jax.random.split(k)
        bound = 1.0 / jnp.sqrt(jnp.float32(fan_in))
        w = jax.random.uniform(kw, (fan_in, fan_out), jnp.float32, -bound, bound)
        b = jax.random.uniform(kb, (1, fan_out), jnp.float32, -bound, bound)
        return w, b

    k1, k2, k3 = jax.random.split(key, 3)
    w1, b1 = linear_init(k1, D_IN, H1)
    w2, b2 = linear_init(k2, H1, H2)
    w3, b3 = linear_init(k3, H2, D_OUT)
    return (w1, b1, w2, b2, w3, b3)


def nn_y_ref(x, params):
    w1, b1, w2, b2, w3, b3 = params
    h1 = jnp.maximum(x @ w1 + b1, 0.0)
    h2 = jnp.maximum(h1 @ w2 + b2, 0.0)
    return h2 @ w3 + b3


if __name__ == "__main__":
    key = jax.random.PRNGKey(0)
    kx, kx2, kp = jax.random.split(key, 3)

    params = init_params(kp)

    # Small, ragged batch (single 128-row tile; exercises tail-row padding).
    B = 10
    x = jax.random.normal(kx, (B, D_IN), jnp.float32)
    out = jax.block_until_ready(nn_y_forward(x, params))
    ref = nn_y_ref(x, params)
    assert out.shape == (B, D_OUT), out.shape
    # bf16 MXU operands with f32 accumulation -> small deviation vs pure-f32 ref.
    assert jnp.allclose(out, ref, atol=5e-2, rtol=5e-2), "mismatch vs reference (small batch)"

    # Larger, ragged batch: multi-step grid (pipelined x stream; 2-TC sharding on v7x).
    B2 = 5000
    x2 = jax.random.normal(kx2, (B2, D_IN), jnp.float32)
    out2 = jax.block_until_ready(nn_y_forward(x2, params))
    ref2 = nn_y_ref(x2, params)
    assert out2.shape == (B2, D_OUT), out2.shape
    assert jnp.allclose(out2, ref2, atol=5e-2, rtol=5e-2), "mismatch vs reference (large batch)"

    print("KERNEL_OK")
</pallas_src>

<mosaic_0001>
module attributes {stable_mosaic.version = 11 : i64} {
  func.func @mlp_kernel(%arg0: i32, %arg1: memref<128x32xf32, #tpu.memory_space<vmem>>, %arg2: memref<64x32xbf16, #tpu.memory_space<vmem>>, %arg3: memref<64x1xf32, #tpu.memory_space<vmem>>, %arg4: memref<32x64xbf16, #tpu.memory_space<vmem>>, %arg5: memref<32x1xf32, #tpu.memory_space<vmem>>, %arg6: memref<1x32xbf16, #tpu.memory_space<vmem>>, %arg7: memref<1x1xf32, #tpu.memory_space<vmem>>, %arg8: memref<1x128xf32, #tpu.memory_space<vmem>>) attributes {dimension_semantics = [#tpu.dimension_semantics<parallel>], iteration_bounds = array<i64: 1>, scalar_prefetch = 0 : i64, scratch_operands = 0 : i64, tpu.core_type = #tpu.core_type<tc>, window_params = [{transform_indices = @transform_0, window_bounds = array<i64: 128, 32>}, {pipeline_mode = #tpu.pipeline_mode<synchronous>, transform_indices = @transform_1, window_bounds = array<i64: 64, 32>}, {pipeline_mode = #tpu.pipeline_mode<synchronous>, transform_indices = @transform_2, window_bounds = array<i64: 64, 1>}, {pipeline_mode = #tpu.pipeline_mode<synchronous>, transform_indices = @transform_3, window_bounds = array<i64: 32, 64>}, {pipeline_mode = #tpu.pipeline_mode<synchronous>, transform_indices = @transform_4, window_bounds = array<i64: 32, 1>}, {pipeline_mode = #tpu.pipeline_mode<synchronous>, transform_indices = @transform_5, window_bounds = array<i64: 1, 32>}, {pipeline_mode = #tpu.pipeline_mode<synchronous>, transform_indices = @transform_6, window_bounds = array<i64: 1, 1>}, {transform_indices = @transform_7, window_bounds = array<i64: 1, 128>}]} {
    %c0 = arith.constant 0 : index
    %c0_0 = arith.constant 0 : index
    %0 = vector.load %arg1[%c0, %c0_0] : memref<128x32xf32, #tpu.memory_space<vmem>>, vector<128x32xf32>
    %1 = arith.truncf %0 : vector<128x32xf32> to vector<128x32xbf16>
    %c0_1 = arith.constant 0 : index
    %c0_2 = arith.constant 0 : index
    %2 = vector.load %arg2[%c0_1, %c0_2] : memref<64x32xbf16, #tpu.memory_space<vmem>>, vector<64x32xbf16>
    %cst = arith.constant dense<0.000000e+00> : vector<64x128xf32>
    %3 = tpu.matmul %2, %1, %cst {dimension_numbers = #tpu.dot_dimension_numbers<[1], [1], [0], [0], [0, 0, 1, 0], [], []>} : vector<64x32xbf16>, vector<128x32xbf16>, vector<64x128xf32> -> vector<64x128xf32>
    %c0_3 = arith.constant 0 : index
    %c0_4 = arith.constant 0 : index
    %4 = vector.load %arg3[%c0_3, %c0_4] : memref<64x1xf32, #tpu.memory_space<vmem>>, vector<64x1xf32>
    %5 = vector.broadcast %4 : vector<64x1xf32> to vector<64x128xf32>
    %6 = arith.addf %3, %5 : vector<64x128xf32>
    %cst_5 = arith.constant 0.000000e+00 : f32
    %7 = vector.broadcast %cst_5 : f32 to vector<64x128xf32>
    %8 = arith.maximumf %6, %7 : vector<64x128xf32>
    %c0_6 = arith.constant 0 : index
    %c0_7 = arith.constant 0 : index
    %9 = vector.load %arg4[%c0_6, %c0_7] : memref<32x64xbf16, #tpu.memory_space<vmem>>, vector<32x64xbf16>
    %10 = arith.truncf %8 : vector<64x128xf32> to vector<64x128xbf16>
    %cst_8 = arith.constant dense<0.000000e+00> : vector<32x128xf32>
    %11 = tpu.matmul %9, %10, %cst_8 {dimension_numbers = #tpu.dot_dimension_numbers<[1], [0], [0], [1], [0, 0, 1, 1], [], []>} : vector<32x64xbf16>, vector<64x128xbf16>, vector<32x128xf32> -> vector<32x128xf32>
    %c0_9 = arith.constant 0 : index
    %c0_10 = arith.constant 0 : index
    %12 = vector.load %arg5[%c0_9, %c0_10] : memref<32x1xf32, #tpu.memory_space<vmem>>, vector<32x1xf32>
    %13 = vector.broadcast %12 : vector<32x1xf32> to vector<32x128xf32>
    %14 = arith.addf %11, %13 : vector<32x128xf32>
    %cst_11 = arith.constant 0.000000e+00 : f32
    %15 = vector.broadcast %cst_11 : f32 to vector<32x128xf32>
    %16 = arith.maximumf %14, %15 : vector<32x128xf32>
    %c0_12 = arith.constant 0 : index
    %c0_13 = arith.constant 0 : index
    %17 = vector.load %arg6[%c0_12, %c0_13] : memref<1x32xbf16, #tpu.memory_space<vmem>>, vector<1x32xbf16>
    %18 = arith.truncf %16 : vector<32x128xf32> to vector<32x128xbf16>
    %cst_14 = arith.constant dense<0.000000e+00> : vector<1x128xf32>
    %19 = tpu.matmul %17, %18, %cst_14 {dimension_numbers = #tpu.dot_dimension_numbers<[1], [0], [0], [1], [0, 0, 1, 1], [], []>} : vector<1x32xbf16>, vector<32x128xbf16>, vector<1x128xf32> -> vector<1x128xf32>
    %c0_15 = arith.constant 0 : index
    %c0_16 = arith.constant 0 : index
    %20 = vector.load %arg7[%c0_15, %c0_16] : memref<1x1xf32, #tpu.memory_space<vmem>>, vector<1x1xf32>
    %21 = vector.broadcast %20 : vector<1x1xf32> to vector<1x128xf32>
    %22 = arith.addf %19, %21 : vector<1x128xf32>
    %c0_17 = arith.constant 0 : index
    %c0_18 = arith.constant 0 : index
    %23 = vector.load %arg8[%c0_17, %c0_18] : memref<1x128xf32, #tpu.memory_space<vmem>>, vector<1x128xf32>
    tpu.vector_store %arg8[%c0_17, %c0_18], %22 {strides = array<i32>} : memref<1x128xf32, #tpu.memory_space<vmem>>, vector<1x128xf32>,
    return
  }
  func.func @transform_0(%arg0: i32) -> (i32, i32) {
    %c0_i32 = arith.constant 0 : i32
    %c0_i32_0 = arith.constant 0 : i32
    return %arg0, %c0_i32 : i32, i32
  }
  func.func @transform_1(%arg0: i32) -> (i32, i32) {
    %c0_i32 = arith.constant 0 : i32
    %c0_i32_0 = arith.constant 0 : i32
    %c0_i32_1 = arith.constant 0 : i32
    return %c0_i32, %c0_i32_0 : i32, i32
  }
  func.func @transform_2(%arg0: i32) -> (i32, i32) {
    %c0_i32 = arith.constant 0 : i32
    %c0_i32_0 = arith.constant 0 : i32
    %c0_i32_1 = arith.constant 0 : i32
    return %c0_i32, %c0_i32_0 : i32, i32
  }
  func.func @transform_3(%arg0: i32) -> (i32, i32) {
    %c0_i32 = arith.constant 0 : i32
    %c0_i32_0 = arith.constant 0 : i32
    %c0_i32_1 = arith.constant 0 : i32
    return %c0_i32, %c0_i32_0 : i32, i32
  }
  func.func @transform_4(%arg0: i32) -> (i32, i32) {
    %c0_i32 = arith.constant 0 : i32
    %c0_i32_0 = arith.constant 0 : i32
    %c0_i32_1 = arith.constant 0 : i32
    return %c0_i32, %c0_i32_0 : i32, i32
  }
  func.func @transform_5(%arg0: i32) -> (i32, i32) {
    %c0_i32 = arith.constant 0 : i32
    %c0_i32_0 = arith.constant 0 : i32
    %c0_i32_1 = arith.constant 0 : i32
    return %c0_i32, %c0_i32_0 : i32, i32
  }
  func.func @transform_6(%arg0: i32) -> (i32, i32) {
    %c0_i32 = arith.constant 0 : i32
    %c0_i32_0 = arith.constant 0 : i32
    %c0_i32_1 = arith.constant 0 : i32
    return %c0_i32, %c0_i32_0 : i32, i32
  }
  func.func @transform_7(%arg0: i32) -> (i32, i32) {
    %c0_i32 = arith.constant 0 : i32
    %c0_i32_0 = arith.constant 0 : i32
    return %c0_i32, %arg0 : i32, i32
  }
}

</mosaic_0001>

<llo_original>
// kernel: tpu_custom_call.1
$region0: #{tpu_custom_call.1}
  #allocation0 [shape = 'u32[]', space=smem, size = 0x4, offset = 0x4, fixed_abs, tag = 'smem constant byte address 0x4 - core index']
  #allocation1 [shape = 'u32[72,128]{1,0:T(1,128)}', space=vmem, size = 0x9000, scoped, tag = 'internal scratch']
  #allocation2 [shape = 'f32[1,1]{1,0:T(1,128)S(1)}', space=vmem, size = 0x200, scoped, tag = 'scoped memory for tpu_custom_call.1']
  %s0 = inlined_call_operand.vmem [shape: f32[128,32], index: 0, kind: input, shape index: {}]
  %s1 = inlined_call_operand.vmem [shape: bf16[64,32], index: 1, kind: input, shape index: {}]
  %s2 = inlined_call_operand.vmem [shape: f32[64,1], index: 2, kind: input, shape index: {}]
  %s3 = inlined_call_operand.vmem [shape: bf16[32,64], index: 3, kind: input, shape index: {}]
  %s4 = inlined_call_operand.vmem [shape: f32[32,1], index: 4, kind: input, shape index: {}]
  %s5 = inlined_call_operand.vmem [shape: bf16[1,32], index: 5, kind: input, shape index: {}]
  %s6 = inlined_call_operand.<no memory space> [shape: f32[1,1], index: 6, kind: input, shape index: {}]
  %s7 = inlined_call_operand.hbm [shape: f32[1,128], index: 7, kind: output, shape index: {}]
  %s8 = sld [smem:[#allocation0]]
  $region38: #{tpu_custom_call.1} parent=0
    _
  %s10 = ssub.s32 1, %s8
  %s11 = scalar_select 0, %s10, %s8
  %v12 = vstv %s6
  %13 = vst [vmem:[#allocation2] sm:$0x1] %v12
  $region1: #{tpu_custom_call.1} parent=0
    #allocation3 [shape = 'u8[512]{0}', space=vmem, size = 0x400, scoped, tag = 'output window, operand 0, single buffered']
    #allocation4 [shape = 's32[1]{0}', space=sflag, size = 0x4, scoped, tag = 'scoped memory for tpu_custom_call.1']
    %14 = vsyncpa [#allocation4], 0
    // Predicated region
    $region2: #{tpu_custom_call.1} parent=1 // pred_check
      _
    $region3: #{tpu_custom_call.1} parent=1 // pred_check_branch
      %16 = sbr.rel (0) target = $region5
    $region4: #{tpu_custom_call.1} parent=1 // pred_region
      _
    $region5: #{tpu_custom_call.1} parent=1 // pred_fallthru
      _
    // Predicated region
    $region6: #{tpu_custom_call.1} parent=1 // pred_check
      _
    $region7: #{tpu_custom_call.1} parent=1 // pred_check_branch
      %18 = sbr.rel (0) target = $region9
    $region8: #{tpu_custom_call.1} parent=1 // pred_region
      _
    $region9: #{tpu_custom_call.1} parent=1 // pred_fallthru
      _
    // Predicated region
    $region10: #{tpu_custom_call.1} parent=1 // pred_check
      _
    $region11: #{tpu_custom_call.1} parent=1 // pred_check_branch
      %20 = sbr.rel (0) target = $region13
    $region12: #{tpu_custom_call.1} parent=1 // pred_region
      _
    $region13: #{tpu_custom_call.1} parent=1 // pred_fallthru
      _
    // Predicated region
    $region14: #{tpu_custom_call.1} parent=1 // pred_check
      _
    $region15: #{tpu_custom_call.1} parent=1 // pred_check_branch
      %22 = sbr.rel (0) target = $region17
    $region16: #{tpu_custom_call.1} parent=1 // pred_region
      _
    $region17: #{tpu_custom_call.1} parent=1 // pred_fallthru
      _
    // Predicated region
    $region18: #{tpu_custom_call.1} parent=1 // pred_check
      _
    $region19: #{tpu_custom_call.1} parent=1 // pred_check_branch
      %24 = sbr.rel (0) target = $region21
    $region20: #{tpu_custom_call.1} parent=1 // pred_region
      _
    $region21: #{tpu_custom_call.1} parent=1 // pred_fallthru
      _
    // Predicated region
    $region22: #{tpu_custom_call.1} parent=1 // pred_check
      _
    $region23: #{tpu_custom_call.1} parent=1 // pred_check_branch
      %26 = sbr.rel (0) target = $region25
    $region24: #{tpu_custom_call.1} parent=1 // pred_region
      _
    $region25: #{tpu_custom_call.1} parent=1 // pred_fallthru
      _
    // Predicated region
    $region26: #{tpu_custom_call.1} parent=1 // pred_check
      _
    $region27: #{tpu_custom_call.1} parent=1 // pred_check_branch
      %28 = sbr.rel (0) target = $region29
    $region28: #{tpu_custom_call.1} parent=1 // pred_region
      _
    $region29: #{tpu_custom_call.1} parent=1 // pred_fallthru
      _
    %v30 = vld [vmem:[%s0] sm:$0xff]
    %v31 = vld [vmem:[%s0 + $0x8] sm:$0xff]
    %v32 = vld [vmem:[%s0 + $0x10] sm:$0xff]
    %v33 = vld [vmem:[%s0 + $0x18] sm:$0xff]
    %v34 = vld [vmem:[%s0 + $0x20] sm:$0xff]
    %v35 = vld [vmem:[%s0 + $0x28] sm:$0xff]
    %v36 = vld [vmem:[%s0 + $0x30] sm:$0xff]
    %v37 = vld [vmem:[%s0 + $0x38] sm:$0xff]
    %v38 = vld [vmem:[%s0 + $0x40] sm:$0xff]
    %v39 = vld [vmem:[%s0 + $0x48] sm:$0xff]
    %v40 = vld [vmem:[%s0 + $0x50] sm:$0xff]
    %v41 = vld [vmem:[%s0 + $0x58] sm:$0xff]
    %v42 = vld [vmem:[%s0 + $0x60] sm:$0xff]
    %v43 = vld [vmem:[%s0 + $0x68] sm:$0xff]
    %v44 = vld [vmem:[%s0 + $0x70] sm:$0xff]
    %v45 = vld [vmem:[%s0 + $0x78] sm:$0xff]
    %v46 = vpack.c.bf16 %v31, %v30
    %v47 = vpack.c.bf16 %v33, %v32
    %v48 = vpack.c.bf16 %v35, %v34
    %v49 = vpack.c.bf16 %v37, %v36
    %v50 = vpack.c.bf16 %v39, %v38
    %v51 = vpack.c.bf16 %v41, %v40
    %v52 = vpack.c.bf16 %v43, %v42
    %v53 = vpack.c.bf16 %v45, %v44
    %v54 = vld [vmem:[%s1] sm:$0xf]
    %v55 = vld [vmem:[%s1 + $0x4] sm:$0xf]
    %v56 = vld [vmem:[%s1 + $0x8] sm:$0xf]
    %v57 = vld [vmem:[%s1 + $0xc] sm:$0xf]
    %v58 = vld [vmem:[%s1 + $0x10] sm:$0xf]
    %v59 = vld [vmem:[%s1 + $0x14] sm:$0xf]
    %v60 = vld [vmem:[%s1 + $0x18] sm:$0xf]
    %v61 = vld [vmem:[%s1 + $0x1c] sm:$0xf]
    %v62 = vld [vmem:[%s2] sm:$0xff]
    %v63 = vld [vmem:[%s2 + $0x8] sm:$0xff]
    %v64 = vld [vmem:[%s2 + $0x10] sm:$0xff]
    %v65 = vld [vmem:[%s2 + $0x18] sm:$0xff]
    %v66 = vld [vmem:[%s2 + $0x20] sm:$0xff]
    %v67 = vld [vmem:[%s2 + $0x28] sm:$0xff]
    %v68 = vld [vmem:[%s2 + $0x30] sm:$0xff]
    %v69 = vld [vmem:[%s2 + $0x38] sm:$0xff]
    %71 = vset.pattern.permute.xlu0 0
    %72 = vperm.xlu0 %71, %v62
    %v73 = vpop.permute.xlu0 %72
    %76 = vset.pattern.permute.xlu0 0
    %77 = vperm.xlu0 %76, %v63
    %v78 = vpop.permute.xlu0 %77
    %81 = vset.pattern.permute.xlu0 0
    %82 = vperm.xlu0 %81, %v64
    %v83 = vpop.permute.xlu0 %82
    %86 = vset.pattern.permute.xlu0 0
    %87 = vperm.xlu0 %86, %v65
    %v88 = vpop.permute.xlu0 %87
    %91 = vset.pattern.permute.xlu0 0
    %92 = vperm.xlu0 %91, %v66
    %v93 = vpop.permute.xlu0 %92
    %96 = vset.pattern.permute.xlu0 0
    %97 = vperm.xlu0 %96, %v67
    %v98 = vpop.permute.xlu0 %97
    %101 = vset.pattern.permute.xlu0 0
    %102 = vperm.xlu0 %101, %v68
    %v103 = vpop.permute.xlu0 %102
    %106 = vset.pattern.permute.xlu0 0
    %107 = vperm.xlu0 %106, %v69
    %v108 = vpop.permute.xlu0 %107
    %v118 = vunpack.c.l.b16 %v54
    %v119 = vunpack.c.l.b16 %v55
    %v120 = vunpack.c.l.b16 %v56
    %v121 = vunpack.c.l.b16 %v57
    %v122 = vunpack.c.l.b16 %v58
    %v123 = vunpack.c.l.b16 %v59
    %v124 = vunpack.c.l.b16 %v60
    %v125 = vunpack.c.l.b16 %v61
    %v126 = vpack.c.b16 %v119, %v118
    %v127 = vpack.c.b16 %v121, %v120
    %v128 = vpack.c.b16 %v123, %v122
    %v129 = vpack.c.b16 %v125, %v124
    %vm130 = vcmask 261120
    %v132 = vsel %vm130, %v126, 0
    %v135 = vsel %vm130, %v127, 0
    %v138 = vsel %vm130, %v128, 0
    %v141 = vsel %vm130, %v129, 0
    %v144 = vsel %vm130, %v46, 0
    %v147 = vsel %vm130, %v47, 0
    %v150 = vsel %vm130, %v48, 0
    %v153 = vsel %vm130, %v49, 0
    %v156 = vsel %vm130, %v50, 0
    %v159 = vsel %vm130, %v51, 0
    %v162 = vsel %vm130, %v52, 0
    %v165 = vsel %vm130, %v53, 0
    %167 = vmatpush.bf16.xpose.msra.mxu0 %v165
    %168 = vmatpush.bf16.xpose.msra.mxu0 %v162
    %169 = vmatpush.bf16.xpose.msra.mxu0 %v159
    %170 = vmatpush.bf16.xpose.msra.mxu0 %v156
    %171 = vmatpush.bf16.xpose.msra.mxu0 %v153
    %172 = vmatpush.bf16.xpose.msra.mxu0 %v150
    %173 = vmatpush.bf16.xpose.msra.mxu0 %v147
    %174 = vmatpush.bf16.xpose.msra.mxu0 %v144
    %175 = vmatmul.bf16.gmra.mxu0 %v132
    %v176 = vpop.f32.mrf.mxu0
    %v177 = vadd.f32 %v73, %v176
    %v178 = vpop.f32.mrf.mxu0
    %v179 = vadd.f32 %v78, %v178
    %180 = vmatmul.bf16.gmra.mxu0 %v135
    %v181 = vpop.f32.mrf.mxu0
    %v182 = vadd.f32 %v83, %v181
    %v183 = vpop.f32.mrf.mxu0
    %v184 = vadd.f32 %v88, %v183
    %185 = vmatmul.bf16.gmra.mxu0 %v138
    %v186 = vpop.f32.mrf.mxu0
    %v187 = vadd.f32 %v93, %v186
    %v188 = vpop.f32.mrf.mxu0
    %v189 = vadd.f32 %v98, %v188
    %190 = vmatmul.bf16.gmra.mxu0 %v141
    %v191 = vpop.f32.mrf.mxu0
    %v192 = vadd.f32 %v103, %v191
    %v193 = vpop.f32.mrf.mxu0
    %v194 = vadd.f32 %v108, %v193
    %195 = vdwg.mxu0
    %v196 = vmax.f32 %v177, 0.0
    %v197 = vmax.f32 %v179, 0.0
    %v198 = vmax.f32 %v182, 0.0
    %v199 = vmax.f32 %v184, 0.0
    %v200 = vmax.f32 %v187, 0.0
    %v201 = vmax.f32 %v189, 0.0
    %v202 = vmax.f32 %v192, 0.0
    %v203 = vmax.f32 %v194, 0.0
    %v204 = vld [vmem:[%s3] sm:$0xf]
    %v205 = vld [vmem:[%s3 + $0x4] sm:$0xf]
    %v206 = vld [vmem:[%s3 + $0x8] sm:$0xf]
    %v207 = vld [vmem:[%s3 + $0xc] sm:$0xf]
    %v208 = vpack.c.bf16 %v197, %v196
    %v209 = vpack.c.bf16 %v199, %v198
    %v210 = vpack.c.bf16 %v201, %v200
    %v211 = vpack.c.bf16 %v203, %v202
    %v212 = vld [vmem:[%s4] sm:$0xff]
    %v213 = vld [vmem:[%s4 + $0x8] sm:$0xff]
    %v214 = vld [vmem:[%s4 + $0x10] sm:$0xff]
    %v215 = vld [vmem:[%s4 + $0x18] sm:$0xff]
    %217 = vset.pattern.permute.xlu0 0
    %218 = vperm.xlu0 %217, %v212
    %v219 = vpop.permute.xlu0 %218
    %222 = vset.pattern.permute.xlu0 0
    %223 = vperm.xlu0 %222, %v213
    %v224 = vpop.permute.xlu0 %223
    %227 = vset.pattern.permute.xlu0 0
    %228 = vperm.xlu0 %227, %v214
    %v229 = vpop.permute.xlu0 %228
    %232 = vset.pattern.permute.xlu0 0
    %233 = vperm.xlu0 %232, %v215
    %v234 = vpop.permute.xlu0 %233
    %v240 = vunpack.c.l.b16 %v204
    %v241 = vunpack.c.l.b16 %v205
    %v242 = vunpack.c.l.b16 %v206
    %v243 = vunpack.c.l.b16 %v207
    %v244 = vpack.c.b16 %v241, %v240
    %v245 = vpack.c.b16 %v243, %v242
    %vm246 = vcmask 523264
    %v248 = vsel %vm246, %v244, 0
    %v251 = vsel %vm246, %v245, 0
    %253 = vmatpush.bf16.msra.mxu0 0
    %254 = vmatpush.bf16.msra.mxu0 0
    %255 = vmatpush.bf16.msra.mxu0 0
    %256 = vmatpush.bf16.msra.mxu0 0
    %257 = vmatpush.bf16.msra.mxu0 %v211
    %258 = vmatpush.bf16.msra.mxu0 %v210
    %259 = vmatpush.bf16.msra.mxu0 %v209
    %260 = vmatpush.bf16.msra.mxu0 %v208
    %261 = vmatmul.bf16.gmra.mxu0 %v248
    %v262 = vpop.f32.mrf.mxu0
    %v263 = vadd.f32 %v219, %v262
    %v264 = vpop.f32.mrf.mxu0
    %v265 = vadd.f32 %v224, %v264
    %266 = vmatmul.bf16.gmra.mxu0 %v251
    %v267 = vpop.f32.mrf.mxu0
    %v268 = vadd.f32 %v229, %v267
    %v269 = vpop.f32.mrf.mxu0
    %v270 = vadd.f32 %v234, %v269
    %271 = vdwg.mxu0
    %v272 = vmax.f32 %v263, 0.0
    %v273 = vmax.f32 %v265, 0.0
    %v274 = vmax.f32 %v268, 0.0
    %v275 = vmax.f32 %v270, 0.0
    %v276 = vld [vmem:[%s5] sm:$0x1]
    %v277 = vpack.c.bf16 %v273, %v272
    %v278 = vpack.c.bf16 %v275, %v274
    %v279 = vld [vmem:[#allocation2] sm:$0x1]
    %281 = vset.pattern.permute.xlu0 0
    %282 = vperm.xlu0 %281, %v279
    %v283 = vpop.permute.xlu0 %282
    %v285 = vperm.slane %v283, 0
    %v287 = vsel %vm130, %v276, 0
    %289 = vmatpush.bf16.msra.mxu0 0
    %290 = vmatpush.bf16.msra.mxu0 0
    %291 = vmatpush.bf16.msra.mxu0 0
    %292 = vmatpush.bf16.msra.mxu0 0
    %293 = vmatpush.bf16.msra.mxu0 0
    %294 = vmatpush.bf16.msra.mxu0 0
    %295 = vmatpush.bf16.msra.mxu0 %v278
    %296 = vmatpush.bf16.msra.mxu0 %v277
    %297 = vmatmul.bf16.gmra.mxu0 %v287
    %v298 = vpop.f32.mrf.mxu0
    %v299 = vadd.f32 %v285, %v298
    %v300 = vpop.f32.mrf.mxu0
    %301 = vdwg.mxu0
    %302 = vst [vmem:[#allocation3] sm:$0x1] %v299
    // Predicated region
    $region30: #{tpu_custom_call.1} parent=1 // pred_check
      _
    $region31: #{tpu_custom_call.1} parent=1 // pred_check_branch
      %304 = sbr.rel (0) target = $region33
    $region32: #{tpu_custom_call.1} parent=1 // pred_region
      %306 = vsyncadd [#allocation4], 0
      %s308 = sshll.u32 [#allocation3], 4
      %s309 = int_to_ptr.vmem [resolvable:$true] %s308
      %s310 = sshll.u32 %s7, 4
      %s311 = int_to_ptr.hbm [resolvable:$true] %s310
      %313 = dma.vmem_to_hbm [thread:$0]  %s309, 16, %s311, [#allocation4]
    $region33: #{tpu_custom_call.1} parent=1 // pred_fallthru
      _
    // Predicated region
    $region34: #{tpu_custom_call.1} parent=1 // pred_check
      _
    $region35: #{tpu_custom_call.1} parent=1 // pred_check_branch
      %315 = sbr.rel (0) target = $region37
    $region36: #{tpu_custom_call.1} parent=1 // pred_region
      %317 = dma.done [#allocation4], 16
    $region37: #{tpu_custom_call.1} parent=1 // pred_fallthru
      _
    %318 = vsyncpa [#allocation4], 1

</llo_original>
